<compile_context>
chip_gen: v7x
topology: tpu7x:2x2x1
jax: 0.10.0
libtpu: 0.0.40
codegen_flags: <defaults>
</compile_context>

<pallas_src>
import jax
import jax.numpy as jnp
from jax.experimental import pallas as pl
from jax.experimental.pallas import tpu as pltpu

_LANE = 128
_TARGET_BLOCK_BYTES = 2 * 1024 * 1024  # ~2 MiB blocks: safe on v5e/v6e/v7x


def _sum_kernel(x_ref, out_ref, acc_ref):
    # x_ref:   (block_rows, 128) VMEM tile (leading block-index dim squeezed)
    # out_ref: (1, 1) SMEM partial sum for this parallel partition
    # acc_ref: (1, 128) float32 VMEM vector accumulator (persists across the
    #          "arbitrary" reduction axis on each core)
    k = pl.program_id(1)

    @pl.when(k == 0)
    def _():
        acc_ref[...] = jnp.zeros_like(acc_ref)

    # Sublane reduction keeps 128-lane parallelism; accumulation stays on the
    # VPU slot (lots of slack in a memory-bound kernel).
    acc_ref[...] += jnp.sum(
        x_ref[...].astype(jnp.float32), axis=0, keepdims=True
    )

    @pl.when(k == pl.num_programs(1) - 1)
    def _():
        # Single cross-lane reduce + scalar store, once per partition.
        out_ref[0, 0] = jnp.sum(acc_ref[...])


def _pallas_sum(x_main, n_blocks, block_rows, itemsize):
    """Sum of a block-aligned 1D array of n_blocks * block_rows * 128 elems."""
    # Split the block range across TensorCores when it divides evenly
    # (v7x has 2 TCs; a single-TC chip just iterates the axis sequentially).
    num_parts = 2 if (n_blocks >= 2 and n_blocks % 2 == 0) else 1
    blocks_per_part = n_blocks // num_parts

    x3 = x_main.reshape(n_blocks, block_rows, _LANE)
    n_elems = n_blocks * block_rows * _LANE

    cost = pl.CostEstimate(
        flops=int(n_elems),
        transcendentals=0,
        bytes_accessed=int(n_elems * itemsize + 4 * num_parts),
    )

    partials = pl.pallas_call(
        _sum_kernel,
        out_shape=jax.ShapeDtypeStruct((num_parts, 1), jnp.float32),
        grid_spec=pltpu.PrefetchScalarGridSpec(
            num_scalar_prefetch=0,
            grid=(num_parts, blocks_per_part),
            in_specs=[
                pl.BlockSpec(
                    (pl.Squeezed(), block_rows, _LANE),
                    lambda p, k: (p * blocks_per_part + k, 0, 0),
                ),
            ],
            out_specs=pl.BlockSpec(
                (1, 1), lambda p, k: (p, 0), memory_space=pltpu.SMEM
            ),
            scratch_shapes=[pltpu.VMEM((1, _LANE), jnp.float32)],
        ),
        compiler_params=pltpu.CompilerParams(
            dimension_semantics=("parallel", "arbitrary"),
        ),
        cost_estimate=cost,
    )(x3)

    return jnp.sum(partials)


def debug_loss(prediction, sample=None):
    """Pallas implementation of DebugLoss.forward.

    Returns (total_loss, {'total_loss': total_loss}) with total_loss equal to
    the sum of all elements of `prediction`.
    """
    del sample  # unused, matching the PyTorch module

    x = prediction.reshape(-1)  # contiguous flatten: free (bitcast)
    n = x.shape[0]
    itemsize = jnp.dtype(prediction.dtype).itemsize
    # dtype-aware sublane packing: 8 rows (4B), 16 rows (2B), 32 rows (1B)
    sub_mult = {4: 8, 2: 16, 1: 32}.get(itemsize, 8)

    rows_avail = n // _LANE
    target_rows = max(sub_mult, _TARGET_BLOCK_BYTES // (_LANE * itemsize))
    block_rows = min(target_rows, (rows_avail // sub_mult) * sub_mult)

    if block_rows == 0:
        # Input smaller than one vreg-aligned block: reduce directly.
        total_loss = jnp.sum(x.astype(jnp.float32)).astype(prediction.dtype)
        return total_loss, {"total_loss": total_loss}

    block_elems = block_rows * _LANE
    n_blocks = n // block_elems
    n_main = n_blocks * block_elems

    # No full-array pad: kernel handles the aligned prefix (zero-copy reshape
    # when n_main == n), the small unaligned tail is summed outside.
    x_main = x if n_main == n else x[:n_main]
    total = _pallas_sum(x_main, n_blocks, block_rows, itemsize)
    if n_main != n:
        total = total + jnp.sum(x[n_main:].astype(jnp.float32))

    total_loss = total.astype(prediction.dtype)
    loss_dict = {"total_loss": total_loss}
    return total_loss, loss_dict


if __name__ == "__main__":
    key = jax.random.PRNGKey(0)
    k0, k1, k2 = jax.random.split(key, 3)

    # 1) Small NCHW prediction (module-consistent shapes), exact block fit.
    pred_small = jax.random.normal(k0, (2, 4, 16, 16), dtype=jnp.float32)
    sample = {"dummy": jnp.zeros((2,), jnp.float32)}  # unused by forward
    loss_small, ld_small = debug_loss(pred_small, sample)
    loss_small = jax.block_until_ready(loss_small)
    ref_small = jnp.sum(pred_small)
    assert jnp.allclose(loss_small, ref_small, rtol=1e-5, atol=1e-5), (
        loss_small, ref_small)
    assert jnp.allclose(ld_small["total_loss"], ref_small, rtol=1e-5, atol=1e-5)

    # 2) Odd size: exercises the unaligned-tail path (no full-array pad).
    pred_odd = jax.random.normal(k1, (3, 5, 17, 19), dtype=jnp.float32)
    loss_odd, _ = debug_loss(pred_odd, sample)
    loss_odd = jax.block_until_ready(loss_odd)
    ref_odd = jnp.sum(pred_odd)
    assert jnp.allclose(loss_odd, ref_odd, rtol=1e-4, atol=1e-3), (loss_odd, ref_odd)

    # 3) Larger input: exercises multi-block streaming + the 2-way parallel
    #    (megacore) split of the block range.
    pred_big = jax.random.normal(k2, (2, 4, 128, 1024), dtype=jnp.float32)
    loss_big, _ = debug_loss(pred_big, sample)
    loss_big = jax.block_until_ready(loss_big)
    ref_big = jnp.sum(pred_big)
    assert jnp.allclose(loss_big, ref_big, rtol=1e-3, atol=1.0), (loss_big, ref_big)

    print("KERNEL_OK")
</pallas_src>

<mosaic_0001>
module attributes {stable_mosaic.version = 11 : i64} {
  func.func @_sum_kernel(%arg0: i32, %arg1: i32, %arg2: memref<1x16x128xf32, #tpu.memory_space<vmem>>, %arg3: memref<1x1xf32, #tpu.memory_space<smem>>, %arg4: memref<1x128xf32, #tpu.memory_space<vmem>>) attributes {dimension_semantics = [#tpu.dimension_semantics<parallel>, #tpu.dimension_semantics<arbitrary>], iteration_bounds = array<i64: 1, 1>, scalar_prefetch = 0 : i64, scratch_operands = 1 : i64, tpu.core_type = #tpu.core_type<tc>, window_params = [{transform_indices = @transform_0, window_bounds = array<i64: 1, 16, 128>}, {transform_indices = @transform_1, window_bounds = array<i64: 1, 1>}]} {
    %c0_i32 = arith.constant 0 : i32
    %0 = arith.cmpi eq, %arg1, %c0_i32 : i32
    %1 = arith.extui %0 : i1 to i32
    %c0_i32_0 = arith.constant 0 : i32
    %2 = arith.cmpi ne, %1, %c0_i32_0 : i32
    scf.if %2 {
      %cst_9 = arith.constant 0.000000e+00 : f32
      %13 = vector.broadcast %cst_9 : f32 to vector<1x128xf32>
      %c0_10 = arith.constant 0 : index
      %c0_11 = arith.constant 0 : index
      %14 = vector.load %arg4[%c0_10, %c0_11] : memref<1x128xf32, #tpu.memory_space<vmem>>, vector<1x128xf32>
      tpu.vector_store %arg4[%c0_10, %c0_11], %13 {strides = array<i32>} : memref<1x128xf32, #tpu.memory_space<vmem>>, vector<1x128xf32>,
    } else {
    }
    %c0 = arith.constant 0 : index
    %c0_1 = arith.constant 0 : index
    %3 = vector.load %arg4[%c0, %c0_1] : memref<1x128xf32, #tpu.memory_space<vmem>>, vector<1x128xf32>
    %c0_2 = arith.constant 0 : index
    %c0_3 = arith.constant 0 : index
    %c0_4 = arith.constant 0 : index
    %4 = vector.load %arg2[%c0_2, %c0_3, %c0_4] : memref<1x16x128xf32, #tpu.memory_space<vmem>>, vector<1x16x128xf32>
    %5 = vector.shape_cast %4 : vector<1x16x128xf32> to vector<16x128xf32>
    %cst = arith.constant dense<0.000000e+00> : vector<128xf32>
    %6 = vector.multi_reduction <add>, %5, %cst [0] : vector<16x128xf32> to vector<128xf32>
    %7 = vector.shape_cast %6 : vector<128xf32> to vector<1x128xf32>
    %8 = arith.addf %3, %7 : vector<1x128xf32>
    %c0_5 = arith.constant 0 : index
    %c0_6 = arith.constant 0 : index
    %9 = vector.load %arg4[%c0_5, %c0_6] : memref<1x128xf32, #tpu.memory_space<vmem>>, vector<1x128xf32>
    tpu.vector_store %arg4[%c0_5, %c0_6], %8 {strides = array<i32>} : memref<1x128xf32, #tpu.memory_space<vmem>>, vector<1x128xf32>,
    %c0_i32_7 = arith.constant 0 : i32
    %10 = arith.cmpi eq, %arg1, %c0_i32_7 : i32
    %11 = arith.extui %10 : i1 to i32
    %c0_i32_8 = arith.constant 0 : i32
    %12 = arith.cmpi ne, %11, %c0_i32_8 : i32
    scf.if %12 {
      %c0_9 = arith.constant 0 : index
      %c0_10 = arith.constant 0 : index
      %13 = vector.load %arg4[%c0_9, %c0_10] : memref<1x128xf32, #tpu.memory_space<vmem>>, vector<1x128xf32>
      %14 = vector.shape_cast %13 : vector<1x128xf32> to vector<1x1x128xf32>
      %cst_11 = arith.constant dense<0.000000e+00> : vector<1xf32>
      %15 = vector.multi_reduction <add>, %14, %cst_11 [1, 2] : vector<1x1x128xf32> to vector<1xf32>
      %16 = vector.shape_cast %15 : vector<1xf32> to vector<1x1x1xf32>
      %17 = vector.extract %16[0, 0, 0] : f32 from vector<1x1x1xf32>
      %c0_12 = arith.constant 0 : index
      %c0_13 = arith.constant 0 : index
      %18 = memref.load %arg3[%c0_12, %c0_13] : memref<1x1xf32, #tpu.memory_space<smem>>
      memref.store %17, %arg3[%c0_12, %c0_13] : memref<1x1xf32, #tpu.memory_space<smem>>
    } else {
    }
    return
  }
  func.func @transform_0(%arg0: i32, %arg1: i32) -> (i32, i32, i32) {
    %c1_i32 = arith.constant 1 : i32
    %0 = arith.muli %arg0, %c1_i32 : i32
    %1 = arith.addi %0, %arg1 : i32
    %c0_i32 = arith.constant 0 : i32
    %c0_i32_0 = arith.constant 0 : i32
    %c0_i32_1 = arith.constant 0 : i32
    return %1, %c0_i32, %c0_i32_0 : i32, i32, i32
  }
  func.func @transform_1(%arg0: i32, %arg1: i32) -> (i32, i32) {
    %c0_i32 = arith.constant 0 : i32
    %c0_i32_0 = arith.constant 0 : i32
    return %arg0, %c0_i32 : i32, i32
  }
}

</mosaic_0001>

<llo_original>
// kernel: tpu_custom_call.1
$region0: #{tpu_custom_call.1}
  #allocation0 [shape = 'u32[]', space=smem, size = 0x4, offset = 0x4, fixed_abs, tag = 'smem constant byte address 0x4 - core index']
  #allocation1 [shape = 'u32[144,128]{1,0:T(1,128)}', space=vmem, size = 0x12000, scoped, tag = 'internal scratch']
  #allocation2 [shape = 'f32[1,128]{1,0:T(1,128)}', space=vmem, size = 0x200, scoped, tag = 'scratch operand']
  %s0 = inlined_call_operand.hbm [shape: f32[1,16,128], index: 0, kind: input, shape index: {}]
  %s1 = inlined_call_operand.hbm [shape: f32[1,1], index: 1, kind: output, shape index: {}]
  %s2 = sld [smem:[#allocation0]]
  $region26: #{tpu_custom_call.1} parent=0
    _
  %s4 = ssub.s32 1, %s2
  %s5 = scalar_select 0, %s4, %s2
  $region1: #{tpu_custom_call.1} parent=0
    #allocation3 [shape = 'u8[8192]{0}', space=vmem, size = 0x2000, scoped, tag = 'input window, operand 0, single buffered']
    #allocation4 [shape = 's32[1]{0}', space=sflag, size = 0x4, scoped, tag = 'scoped memory for tpu_custom_call.1']
    #allocation5 [shape = 's32[1]{0}', space=sflag, size = 0x4, scoped, tag = 'scoped memory for tpu_custom_call.1']
    #allocation6 [shape = 'u8[512]{0}', space=smem, size = 0x200, scoped, tag = 'output window, operand 0, single buffered']
    %6 = vsyncpa [#allocation4], 0
    %7 = vsyncpa [#allocation5], 0
    // Predicated region
    $region2: #{tpu_custom_call.1} parent=1 // pred_check
      _
    $region3: #{tpu_custom_call.1} parent=1 // pred_check_branch
      %9 = sbr.rel (0) target = $region5
    $region4: #{tpu_custom_call.1} parent=1 // pred_region
      %s10 = sadd.s32 0, 0
      %s12 = ssub.s32 256, 256
      %13 = vsyncadd [#allocation4], %s12
      %s14 = smul.addr %s10, 2
      %s15 = smul.addr %s14, 128
      %s16 = scalar_lea.hbm %s0, %s15
      %s17 = sshll.u32 [#allocation3], 4
      %s18 = int_to_ptr.vmem [resolvable:$true] %s17
      %23 = dma.hbm_to_vmem [thread:$0]  %s16, 256, %s18, [#allocation4], 128, 128, 8
    $region5: #{tpu_custom_call.1} parent=1 // pred_fallthru
      _
    // Predicated region
    $region6: #{tpu_custom_call.1} parent=1 // pred_check
      _
    $region7: #{tpu_custom_call.1} parent=1 // pred_check_branch
      %25 = sbr.rel (0) target = $region9
    $region8: #{tpu_custom_call.1} parent=1 // pred_region
      %26 = dma.done [#allocation4], 256
    $region9: #{tpu_custom_call.1} parent=1 // pred_fallthru
      _
    %s27 = sadd.s32 0, 0
    %p28 = scmp.eq.s32.totalorder 0, 0
    // Predicated region
    $region10: #{tpu_custom_call.1} parent=1 // pred_check
      %p29 = pneg %p28
    $region11: #{tpu_custom_call.1} parent=1 // pred_check_branch
      %31 = sbr.rel (%p29) target = $region13
    $region12: #{tpu_custom_call.1} parent=1 // pred_region
      %32 = vst [vmem:[#allocation2] sm:$0x1] 0.0
    $region13: #{tpu_custom_call.1} parent=1 // pred_fallthru
      _
    %v33 = vld [vmem:[#allocation2] sm:$0x1]
    %v34 = vld [vmem:[#allocation3] sm:$0xff]
    %v35 = vld [vmem:[#allocation3 + $0x8] sm:$0xff]
    %v36 = vadd.f32 %v34, %v35
    %v37 = vrot.slane %v36, 4
    %v38 = vadd.f32 %v36, %v37
    %v39 = vrot.slane %v38, 2
    %v40 = vadd.f32 %v38, %v39
    %v41 = vrot.slane %v40, 1
    %v42 = vadd.f32 %v40, %v41
    %v43 = vadd.f32 %v33, %v42
    %44 = vst [vmem:[#allocation2] sm:$0x1] %v43
    // Predicated region
    $region14: #{tpu_custom_call.1} parent=1 // pred_check
      %p45 = pneg %p28
    $region15: #{tpu_custom_call.1} parent=1 // pred_check_branch
      %47 = sbr.rel (%p45) target = $region17
    $region16: #{tpu_custom_call.1} parent=1 // pred_region
      %v48 = vld [vmem:[#allocation2] sm:$0x1]
      %vm49 = vcmask 1040384
      %v50 = vsel %vm49, %v48, 0.0
      %51 = vadd.xlane.f32.xlu0 %v50
      %v52 = vpop.xlane.xlu0 %51
      %v53 = vrot.slane %v52, 4
      %v54 = vadd.f32 %v52, %v53
      %v55 = vrot.slane %v54, 2
      %v56 = vadd.f32 %v54, %v55
      %v57 = vrot.slane %v56, 1
      %v58 = vadd.f32 %v56, %v57
      %s59 = vtos %v58
      %s60 = scalar_lea.smem [#allocation6], 0
      %61 = sst [smem:[%s60]] %s59
    $region17: #{tpu_custom_call.1} parent=1 // pred_fallthru
      _
    // Predicated region
    $region18: #{tpu_custom_call.1} parent=1 // pred_check
      _
    $region19: #{tpu_custom_call.1} parent=1 // pred_check_branch
      %63 = sbr.rel (0) target = $region21
    $region20: #{tpu_custom_call.1} parent=1 // pred_region
      %s65 = ssub.s32 16, 16
      %66 = vsyncadd [#allocation5], %s65
      %69 = dma.smem_to_hbm [#allocation6], 16, %s1, [#allocation5]
    $region21: #{tpu_custom_call.1} parent=1 // pred_fallthru
      _
    // Predicated region
    $region22: #{tpu_custom_call.1} parent=1 // pred_check
      _
    $region23: #{tpu_custom_call.1} parent=1 // pred_check_branch
      %71 = sbr.rel (0) target = $region25
    $region24: #{tpu_custom_call.1} parent=1 // pred_region
      %72 = dma.done [#allocation5], 16
    $region25: #{tpu_custom_call.1} parent=1 // pred_fallthru
      _
    %73 = sfence
    %74 = vsyncpa [#allocation4], 1
    %75 = vsyncpa [#allocation5], 1

</llo_original>
